<compile_context>
chip_gen: v7x
topology: tpu7x:2x2x1
jax: 0.10.0
libtpu: 0.0.40
codegen_flags: <defaults>
</compile_context>

<pallas_src>
import functools

import jax
import jax.numpy as jnp
from jax.experimental import pallas as pl
from jax.experimental.pallas import tpu as pltpu


_SUBLANE = {4: 8, 2: 16, 1: 32}  # itemsize -> sublane packing multiple


def _round_up(x: int, m: int) -> int:
    return ((x + m - 1) // m) * m


def _vmem_capacity_bytes() -> int:
    """Physical per-core VMEM (64 MiB on v7x, 128 MiB on v5e/v6e); safe fallback."""
    try:
        info = pltpu.get_tpu_info()
        cap = getattr(info, "vmem_capacity_bytes", None)
        if cap:
            return int(cap)
    except Exception:
        pass
    return 64 << 20  # conservative (v7x per-TC)


def visual_projection_kernel(x_ref, w_ref, b_ref, o_ref):
    # x_ref: (TR, Din)  w_ref: (Din, Dp)  b_ref: (1, Dp) f32  o_ref: (TR, Dp)
    acc = jnp.dot(x_ref[...], w_ref[...], preferred_element_type=jnp.float32)
    o_ref[...] = (acc + b_ref[...]).astype(o_ref.dtype)


def prepare_visual_projection_params(weight, bias, dtype):
    """One-time packing of nn.Conv1d(kernel_size=1) params.

    weight: (Dout, Din) or (Dout, Din, 1)   bias: (Dout,)
    Returns (w_packed (Din, Dout_pad) in `dtype`, b_packed (1, Dout_pad) f32, Dout).
    Hoisted out of the per-call path: transpose / cast / lane padding happen once.
    """
    w = jnp.asarray(weight)
    dout, din = int(w.shape[0]), int(w.shape[1])
    w = w.reshape(dout, din).T.astype(dtype)                 # (Din, Dout)
    b = jnp.asarray(bias).reshape(1, dout).astype(jnp.float32)
    dp = _round_up(max(dout, 1), 128)                        # lane-dense output width
    if dp != dout:
        w = jnp.pad(w, ((0, 0), (0, dp - dout)))
        b = jnp.pad(b, ((0, 0), (0, dp - dout)))
    return w, b, dout


@functools.partial(jax.jit, static_argnames=("tr", "vmem_limit"))
def _projection_call(x2, w, b, *, tr, vmem_limit):
    R, Din = x2.shape
    Dp = w.shape[1]
    grid = (pl.cdiv(R, tr),)  # partial tail block masked by Pallas (no jnp.pad copy)
    return pl.pallas_call(
        visual_projection_kernel,
        out_shape=jax.ShapeDtypeStruct((R, Dp), x2.dtype),
        grid_spec=pltpu.PrefetchScalarGridSpec(
            num_scalar_prefetch=0,
            grid=grid,
            in_specs=[
                pl.BlockSpec((tr, Din), lambda i: (i, 0)),   # x row tile (streamed)
                pl.BlockSpec((Din, Dp), lambda i: (0, 0)),   # weight (constant block)
                pl.BlockSpec((1, Dp), lambda i: (0, 0)),     # bias row (constant block)
            ],
            out_specs=pl.BlockSpec((tr, Dp), lambda i: (i, 0)),
        ),
        compiler_params=pltpu.CompilerParams(
            dimension_semantics=("parallel",),
            vmem_limit_bytes=vmem_limit,
        ),
    )(x2, w, b)


def visual_projection(x, w_packed, b_packed, dout, *, row_tile: int = 1024):
    """VisualProjection forward (drop_rate=0.0 / eval: dropout is identity).

    x:        (B, T, Din)
    w_packed: (Din, Dout_pad)  from prepare_visual_projection_params
    b_packed: (1, Dout_pad) f32
    dout:     true output channel count
    returns   (B, T, dout) in x.dtype
    """
    B, T, Din = x.shape
    Dp = w_packed.shape[1]
    R = B * T
    x2 = x.reshape(R, Din)

    itemsize = jnp.dtype(x.dtype).itemsize
    sublane = _SUBLANE.get(itemsize, 8)

    # Generation-aware VMEM budget (account for *double-buffered* x, out, weight,
    # bias plus the compiler-managed f32 accumulator temp).
    vmem_cap = _vmem_capacity_bytes()
    budget = int(0.6 * vmem_cap)

    def vmem_needed(tr):
        return (2 * tr * Din * itemsize        # x tile, double-buffered
                + 2 * tr * Dp * itemsize       # out tile, double-buffered
                + 2 * Din * Dp * itemsize      # weight block, double-buffered
                + 2 * Dp * 4                   # bias row (f32), double-buffered
                + tr * Dp * 4)                 # f32 accumulator temp

    # Target >= ~8 grid steps (keeps both v7x TensorCores busy), >= 256 rows/step,
    # rounded to the dtype sublane multiple; then shrink to fit the VMEM budget.
    tr = min(row_tile, max(256, _round_up(pl.cdiv(R, 8), sublane)))
    tr = _round_up(tr, sublane)
    while tr > sublane and vmem_needed(tr) > budget:
        tr = _round_up(tr // 2, sublane)
    if R <= tr:
        tr = R  # single full-extent block: always layout-legal, no masked tail

    vmem_limit = int(min(max(vmem_needed(tr) + (2 << 20), 16 << 20),
                         int(0.75 * vmem_cap)))

    out = _projection_call(x2, w_packed, b_packed, tr=tr, vmem_limit=vmem_limit)
    if Dp != dout:
        out = out[:, :dout]  # drop lane padding (only when Dout % 128 != 0)
    return out.reshape(B, T, dout)


def visual_projection_ref(x, weight, bias):
    y = jnp.einsum("btd,od->bto", x.astype(jnp.float32), weight.astype(jnp.float32))
    return (y + bias.astype(jnp.float32)).astype(x.dtype)


if __name__ == "__main__":
    B, T, Din, Dout = 2, 8, 32, 64
    key = jax.random.PRNGKey(0)
    kx, kw, kb = jax.random.split(key, 3)

    x = jax.random.normal(kx, (B, T, Din), dtype=jnp.float32)

    # Deterministic parameter init (mimics nn.Conv1d default uniform bounds).
    bound = 1.0 / (Din ** 0.5)
    weight = jax.random.uniform(kw, (Dout, Din), minval=-bound, maxval=bound,
                                dtype=jnp.float32)
    bias = jax.random.uniform(kb, (Dout,), minval=-bound, maxval=bound,
                              dtype=jnp.float32)

    # One-time param packing (hoisted out of the per-call path).
    w_packed, b_packed, dout = prepare_visual_projection_params(weight, bias, x.dtype)

    out = visual_projection(x, w_packed, b_packed, dout)
    out = jax.block_until_ready(out)

    ref = visual_projection_ref(x, weight, bias)
    assert out.shape == (B, T, Dout)
    assert jnp.allclose(out, ref, atol=1e-5, rtol=1e-5), "mismatch vs reference"

    print("KERNEL_OK")
</pallas_src>

<mosaic_0001>
module attributes {stable_mosaic.version = 11 : i64} {
  func.func @visual_projection_kernel(%arg0: i32, %arg1: memref<16x32xf32, #tpu.memory_space<vmem>>, %arg2: memref<32x128xf32, #tpu.memory_space<vmem>>, %arg3: memref<1x128xf32, #tpu.memory_space<vmem>>, %arg4: memref<16x128xf32, #tpu.memory_space<vmem>>) attributes {dimension_semantics = [#tpu.dimension_semantics<parallel>], iteration_bounds = array<i64: 1>, scalar_prefetch = 0 : i64, scratch_operands = 0 : i64, tpu.core_type = #tpu.core_type<tc>, window_params = [{transform_indices = @transform_0, window_bounds = array<i64: 16, 32>}, {pipeline_mode = #tpu.pipeline_mode<synchronous>, transform_indices = @transform_1, window_bounds = array<i64: 32, 128>}, {pipeline_mode = #tpu.pipeline_mode<synchronous>, transform_indices = @transform_2, window_bounds = array<i64: 1, 128>}, {transform_indices = @transform_3, window_bounds = array<i64: 16, 128>}]} {
    %c0 = arith.constant 0 : index
    %c0_0 = arith.constant 0 : index
    %0 = vector.load %arg1[%c0, %c0_0] : memref<16x32xf32, #tpu.memory_space<vmem>>, vector<16x32xf32>
    %c0_1 = arith.constant 0 : index
    %c0_2 = arith.constant 0 : index
    %1 = vector.load %arg2[%c0_1, %c0_2] : memref<32x128xf32, #tpu.memory_space<vmem>>, vector<32x128xf32>
    %cst = arith.constant dense<0.000000e+00> : vector<16x128xf32>
    %2 = tpu.matmul %0, %1, %cst {dimension_numbers = #tpu.dot_dimension_numbers<[1], [0], [0], [1], [0, 0, 1, 1], [], []>} : vector<16x32xf32>, vector<32x128xf32>, vector<16x128xf32> -> vector<16x128xf32>
    %c0_3 = arith.constant 0 : index
    %c0_4 = arith.constant 0 : index
    %3 = vector.load %arg3[%c0_3, %c0_4] : memref<1x128xf32, #tpu.memory_space<vmem>>, vector<1x128xf32>
    %4 = vector.broadcast %3 : vector<1x128xf32> to vector<16x128xf32>
    %5 = arith.addf %2, %4 : vector<16x128xf32>
    %c0_5 = arith.constant 0 : index
    %c0_6 = arith.constant 0 : index
    %6 = vector.load %arg4[%c0_5, %c0_6] : memref<16x128xf32, #tpu.memory_space<vmem>>, vector<16x128xf32>
    tpu.vector_store %arg4[%c0_5, %c0_6], %5 {strides = array<i32>} : memref<16x128xf32, #tpu.memory_space<vmem>>, vector<16x128xf32>,
    return
  }
  func.func @transform_0(%arg0: i32) -> (i32, i32) {
    %c0_i32 = arith.constant 0 : i32
    %c0_i32_0 = arith.constant 0 : i32
    return %arg0, %c0_i32 : i32, i32
  }
  func.func @transform_1(%arg0: i32) -> (i32, i32) {
    %c0_i32 = arith.constant 0 : i32
    %c0_i32_0 = arith.constant 0 : i32
    %c0_i32_1 = arith.constant 0 : i32
    return %c0_i32, %c0_i32_0 : i32, i32
  }
  func.func @transform_2(%arg0: i32) -> (i32, i32) {
    %c0_i32 = arith.constant 0 : i32
    %c0_i32_0 = arith.constant 0 : i32
    %c0_i32_1 = arith.constant 0 : i32
    return %c0_i32, %c0_i32_0 : i32, i32
  }
  func.func @transform_3(%arg0: i32) -> (i32, i32) {
    %c0_i32 = arith.constant 0 : i32
    %c0_i32_0 = arith.constant 0 : i32
    return %arg0, %c0_i32 : i32, i32
  }
}

</mosaic_0001>

<llo_original>
// kernel: _projection_call.1
$region0: #{_projection_call.1}
  #allocation0 [shape = 'u32[]', space=smem, size = 0x4, offset = 0x4, fixed_abs, tag = 'smem constant byte address 0x4 - core index']
  #allocation1 [shape = 'u32[144,128]{1,0:T(1,128)}', space=vmem, size = 0x12000, scoped, tag = 'internal scratch']
  %s0 = inlined_call_operand.hbm [shape: f32[16,32], index: 0, kind: input, shape index: {}]
  %s1 = inlined_call_operand.hbm [shape: f32[32,128], index: 1, kind: input, shape index: {}]
  %s2 = inlined_call_operand.vmem [shape: f32[1,128], index: 2, kind: input, shape index: {}]
  %s3 = inlined_call_operand.hbm [shape: f32[16,128], index: 3, kind: output, shape index: {}]
  %s4 = sld [smem:[#allocation0]]
  $region30: #{_projection_call.1} parent=0
    _
  %s6 = ssub.s32 1, %s4
  %s7 = scalar_select 0, %s6, %s4
  $region1: #{_projection_call.1} parent=0
    #allocation2 [shape = 'u8[8192]{0}', space=vmem, size = 0x2000, scoped, tag = 'input window, operand 0, single buffered']
    #allocation3 [shape = 's32[1]{0}', space=sflag, size = 0x4, scoped, tag = 'scoped memory for _projection_call.1']
    #allocation4 [shape = 's32[1]{0}', space=sflag, size = 0x4, scoped, tag = 'scoped memory for _projection_call.1']
    #allocation5 [shape = 'u8[16384]{0}', space=vmem, size = 0x4000, scoped, tag = 'input window, operand 1, single buffered']
    #allocation6 [shape = 's32[1]{0}', space=sflag, size = 0x4, scoped, tag = 'scoped memory for _projection_call.1']
    #allocation7 [shape = 'u8[8192]{0}', space=vmem, size = 0x2000, scoped, tag = 'output window, operand 0, single buffered']
    %8 = vsyncpa [#allocation3], 0
    %9 = vsyncpa [#allocation6], 0
    %10 = vsyncpa [#allocation4], 0
    // Predicated region
    $region2: #{_projection_call.1} parent=1 // pred_check
      _
    $region3: #{_projection_call.1} parent=1 // pred_check_branch
      %12 = sbr.rel (0) target = $region5
    $region4: #{_projection_call.1} parent=1 // pred_region
      %s14 = ssub.s32 256, 256
      %15 = vsyncadd [#allocation3], %s14
      %s16 = sshll.u32 [#allocation2], 4
      %s17 = int_to_ptr.vmem [resolvable:$true] %s16
      %22 = dma.hbm_to_vmem [thread:$0]  %s0, 256, %s17, [#allocation3], 128, 128, 8
    $region5: #{_projection_call.1} parent=1 // pred_fallthru
      _
    // Predicated region
    $region6: #{_projection_call.1} parent=1 // pred_check
      _
    $region7: #{_projection_call.1} parent=1 // pred_check_branch
      %24 = sbr.rel (0) target = $region9
    $region8: #{_projection_call.1} parent=1 // pred_region
      %s26 = ssub.s32 512, 512
      %27 = vsyncadd [#allocation6], %s26
      %s28 = sshll.u32 [#allocation5], 4
      %s29 = int_to_ptr.vmem [resolvable:$true] %s28
      %34 = dma.hbm_to_vmem [thread:$0]  %s1, 512, %s29, [#allocation6], 128, 128, 8
    $region9: #{_projection_call.1} parent=1 // pred_fallthru
      _
    // Predicated region
    $region10: #{_projection_call.1} parent=1 // pred_check
      _
    $region11: #{_projection_call.1} parent=1 // pred_check_branch
      %36 = sbr.rel (0) target = $region13
    $region12: #{_projection_call.1} parent=1 // pred_region
      _
    $region13: #{_projection_call.1} parent=1 // pred_fallthru
      _
    // Predicated region
    $region14: #{_projection_call.1} parent=1 // pred_check
      _
    $region15: #{_projection_call.1} parent=1 // pred_check_branch
      %38 = sbr.rel (0) target = $region17
    $region16: #{_projection_call.1} parent=1 // pred_region
      %39 = dma.done [#allocation3], 256
    $region17: #{_projection_call.1} parent=1 // pred_fallthru
      _
    // Predicated region
    $region18: #{_projection_call.1} parent=1 // pred_check
      _
    $region19: #{_projection_call.1} parent=1 // pred_check_branch
      %41 = sbr.rel (0) target = $region21
    $region20: #{_projection_call.1} parent=1 // pred_region
      %42 = dma.done [#allocation6], 512
    $region21: #{_projection_call.1} parent=1 // pred_fallthru
      _
    %v43 = vld [vmem:[#allocation2] sm:$0xff]
    %v44 = vld [vmem:[#allocation2 + $0x8] sm:$0xff]
    %v45 = vld [vmem:[#allocation5] sm:$0xff]
    %v46 = vld [vmem:[#allocation5 + $0x8] sm:$0xff]
    %v47 = vld [vmem:[#allocation5 + $0x10] sm:$0xff]
    %v48 = vld [vmem:[#allocation5 + $0x18] sm:$0xff]
    %v49 = vld [vmem:[%s2] sm:$0x1]
    %v51 = vlaneseq
    %v52 = vshrl.u32 %v51, 7
    %v53 = vsub.s32 0, %v52
    %v54 = vrot.slane %v49, %v53
    %vm56 = vcmask 261120
    %v58 = vsel %vm56, %v43, 0
    %v61 = vsel %vm56, %v44, 0
    %63 = vmatprep.subr.mxu0 0.0
    %64 = vmatpush1.msra.mxu0 %v45
    %65 = vmatprep.subr.mxu0 0.0
    %66 = vmatpush1.msra.mxu0 %v46
    %67 = vmatprep.subr.mxu0 0.0
    %68 = vmatpush1.msra.mxu0 %v47
    %69 = vmatprep.subr.mxu0 0.0
    %70 = vmatpush1.msra.mxu0 %v48
    %71 = vmatprep.subr.mxu0 0.0
    %72 = vmatpush1.msra.mxu0 0.0
    %73 = vmatprep.subr.mxu0 0.0
    %74 = vmatpush1.msra.mxu0 0.0
    %75 = vmatprep.subr.mxu0 0.0
    %76 = vmatpush1.msra.mxu0 0.0
    %77 = vmatprep.subr.mxu0 0.0
    %78 = vmatpush1.msra.mxu0 0.0
    %79 = vmatprep.subr.mxu0 0.0
    %80 = vmatpush1.msra.mxu0 0.0
    %81 = vmatprep.subr.mxu0 0.0
    %82 = vmatpush1.msra.mxu0 0.0
    %83 = vmatprep.subr.mxu0 0.0
    %84 = vmatpush1.msra.mxu0 0.0
    %85 = vmatprep.subr.mxu0 0.0
    %86 = vmatpush1.msra.mxu0 0.0
    %87 = vmatprep.subr.mxu0 0.0
    %88 = vmatpush1.msra.mxu0 0.0
    %89 = vmatprep.subr.mxu0 0.0
    %90 = vmatpush1.msra.mxu0 0.0
    %91 = vmatprep.subr.mxu0 0.0
    %92 = vmatpush1.msra.mxu0 0.0
    %93 = vmatprep.subr.mxu0 0.0
    %94 = vmatpush1.msra.mxu0 0.0
    %95 = vmatprep.subr.mxu0 0.0
    %96 = vmatpush1.msra.mxu0 0.0
    %97 = vmatprep.subr.mxu0 0.0
    %98 = vmatpush1.msra.mxu0 0.0
    %99 = vmatprep.subr.mxu0 0.0
    %100 = vmatpush1.msra.mxu0 0.0
    %101 = vmatprep.subr.mxu0 0.0
    %102 = vmatpush1.msra.mxu0 0.0
    %103 = vmatprep.subr.mxu0 0.0
    %104 = vmatpush1.msra.mxu0 0.0
    %105 = vmatprep.subr.mxu0 0.0
    %106 = vmatpush1.msra.mxu0 0.0
    %107 = vmatprep.subr.mxu0 0.0
    %108 = vmatpush1.msra.mxu0 0.0
    %109 = vmatprep.subr.mxu0 0.0
    %110 = vmatpush1.msra.mxu0 0.0
    %111 = vmatprep.subr.mxu0 0.0
    %112 = vmatpush1.msra.mxu0 0.0
    %113 = vmatprep.subr.mxu0 0.0
    %114 = vmatpush1.msra.mxu0 0.0
    %115 = vmatprep.subr.mxu0 0.0
    %116 = vmatpush1.msra.mxu0 0.0
    %117 = vmatprep.subr.mxu0 0.0
    %118 = vmatpush1.msra.mxu0 0.0
    %119 = vmatprep.subr.mxu0 0.0
    %120 = vmatpush1.msra.mxu0 0.0
    %121 = vmatprep.subr.mxu0 0.0
    %122 = vmatpush1.msra.mxu0 0.0
    %123 = vmatprep.subr.mxu0 0.0
    %124 = vmatpush1.msra.mxu0 0.0
    %125 = vmatprep.subr.mxu0 0.0
    %126 = vmatpush1.msra.mxu0 0.0
    %127 = vmatprep.mubr.f32.mxu0 0.0
    %128 = vmatmul.mubr.f32.gmra.mrb[0].mxu0 %v58
    %v129 = vpop.f32.mrb[0].mxu0
    %v130 = vadd.f32 %v54, %v129
    %v131 = vpop.f32.mrb[0].mxu0
    %132 = vmatprep.mubr.f32.mxu0 0.0
    %133 = vmatmul.mubr.f32.gmra.mrb[0].mxu0 %v61
    %v134 = vpop.f32.mrb[0].mxu0
    %v135 = vadd.f32 %v54, %v134
    %v136 = vpop.f32.mrb[0].mxu0
    %137 = vdwg.mxu0
    %138 = vst [vmem:[#allocation7] sm:$0xff] %v130
    %139 = vst [vmem:[#allocation7 + $0x8] sm:$0xff] %v135
    // Predicated region
    $region22: #{_projection_call.1} parent=1 // pred_check
      _
    $region23: #{_projection_call.1} parent=1 // pred_check_branch
      %141 = sbr.rel (0) target = $region25
    $region24: #{_projection_call.1} parent=1 // pred_region
      %s143 = ssub.s32 256, 256
      %144 = vsyncadd [#allocation4], %s143
      %s145 = sshll.u32 [#allocation7], 4
      %s146 = int_to_ptr.vmem [resolvable:$true] %s145
      %151 = dma.vmem_to_hbm [thread:$0]  %s146, 256, %s3, [#allocation4], 128, 128, 8
    $region25: #{_projection_call.1} parent=1 // pred_fallthru
      _
    // Predicated region
    $region26: #{_projection_call.1} parent=1 // pred_check
      _
    $region27: #{_projection_call.1} parent=1 // pred_check_branch
      %153 = sbr.rel (0) target = $region29
    $region28: #{_projection_call.1} parent=1 // pred_region
      %154 = dma.done [#allocation4], 256
    $region29: #{_projection_call.1} parent=1 // pred_fallthru
      _
    %155 = vsyncpa [#allocation3], 1
    %156 = vsyncpa [#allocation6], 1
    %157 = vsyncpa [#allocation4], 1

</llo_original>
